<compile_context>
chip_gen: v5e
topology: v5e:2x2
jax: 0.10.0
libtpu: 0.0.40
codegen_flags: <defaults>
</compile_context>

<pallas_src>
import functools

import jax
import jax.numpy as jnp
from jax.experimental import pallas as pl
from jax.experimental.pallas import tpu as pltpu

_LANE = 128


def _round_up(n, m):
    return ((n + m - 1) // m) * m


# ---------------------------------------------------------------------------
# Pallas kernel
# ---------------------------------------------------------------------------
def hp_lstm_kernel(z_ref, ts_ref, c0_ref,
                   wf_ref, bf_ref,          # fused block-diag gate+hawkes proj
                   wy_ref, by_ref,          # output head
                   out_ref,                 # packed [h | c | y] slab
                   *, hp, op, i_sz, k_sz):
    zin = z_ref[...]                                  # (TB, I+3K) f32
    tb, kin = zin.shape

    # in-kernel beta*time_span scaling: only lanes [I+K : I+2K] are scaled.
    col = jax.lax.broadcasted_iota(jnp.int32, (tb, kin), 1)
    is_beta = (col >= i_sz + k_sz) & (col < i_sz + 2 * k_sz)
    zs = jnp.where(is_beta, zin * ts_ref[...], zin)

    # ONE fused matmul: (TB, I+3K) @ (I+3K, 6*Hp) -> [i|f|c|o|A+C|B]
    acts = jnp.dot(zs.astype(wf_ref.dtype), wf_ref[...],
                   preferred_element_type=jnp.float32) + bf_ref[...]

    i_t = jax.nn.sigmoid(acts[:, 0 * hp:1 * hp])
    f_t = jax.nn.sigmoid(acts[:, 1 * hp:2 * hp])
    g_t = jnp.tanh(acts[:, 2 * hp:3 * hp])
    o_t = jax.nn.sigmoid(acts[:, 3 * hp:4 * hp])
    # exp may overflow for unbounded beta*time_span; tanh(x - inf) = -1,
    # matching the torch semantics.
    hawkes = jnp.tanh(acts[:, 4 * hp:5 * hp] - jnp.exp(acts[:, 5 * hp:6 * hp]))

    c0 = c0_ref[...]                              # (1, Hp), batch-shared state
    c_new = hawkes * (f_t * c0 + i_t * g_t)       # (TB, Hp)
    h_new = o_t * jnp.tanh(c_new)                 # (TB, Hp)

    # output head: bf16 operands, f32 MXU accumulate
    y = jnp.dot(h_new.astype(wy_ref.dtype), wy_ref[...],
                preferred_element_type=jnp.float32) + by_ref[...]

    # lane-dense, 128-aligned stores into one packed slab
    out_ref[:, 0 * hp:1 * hp] = h_new
    out_ref[:, 1 * hp:2 * hp] = c_new
    out_ref[:, 2 * hp:2 * hp + op] = y


# ---------------------------------------------------------------------------
# Parameters: raw (torch-Linear-style) params + packing/padding
# ---------------------------------------------------------------------------
def _linear_init(key, fan_in, fan_out):
    kw, kb = jax.random.split(key)
    bound = 1.0 / (fan_in ** 0.5)
    w = jax.random.uniform(kw, (fan_in, fan_out), jnp.float32, -bound, bound)
    b = jax.random.uniform(kb, (fan_out,), jnp.float32, -bound, bound)
    return w, b


def make_raw_params(key, input_size, hidden_size, output_size, hks_dim=16):
    names = ["A", "B", "C", "W_i", "U_i", "W_f", "U_f", "W_c", "U_c",
             "W_o", "U_o", "W_y"]
    keys = jax.random.split(key, len(names))
    raw = {}
    for name, k in zip(names, keys):
        if name in ("A", "B", "C"):
            w, b = _linear_init(k, hks_dim, hidden_size)
            raw[f"{name}_w"], raw[f"{name}_b"] = w, b
        elif name == "W_y":
            w, b = _linear_init(k, hidden_size, output_size)
            raw["W_y"], raw["W_y_b"] = w, b
        elif name.startswith("W_"):
            w, b = _linear_init(k, input_size, hidden_size)
            raw[name], raw[f"{name}_b"] = w, b
        else:  # U_*
            w, b = _linear_init(k, hidden_size, hidden_size)
            raw[name], raw[f"{name}_b"] = w, b
    raw["b_i"] = jnp.zeros((hidden_size,), jnp.float32)
    raw["b_f"] = jnp.zeros((hidden_size,), jnp.float32)
    raw["b_c"] = jnp.zeros((hidden_size,), jnp.float32)
    raw["b_o"] = jnp.ones((hidden_size,), jnp.float32)
    # D_hks exists in the torch module but is unused in forward() -> omitted.
    return raw


def pack_params(raw, input_size, hidden_size, output_size, hks_dim=16):
    I, H, O, K = input_size, hidden_size, output_size, hks_dim
    Hp = _round_up(H, _LANE)
    Op = _round_up(O, _LANE)
    KIN = I + 3 * K
    NOUT = 6 * Hp            # [i | f | c | o | A+C | B], each padded to 128

    Wf = jnp.zeros((KIN, NOUT), jnp.float32)
    b0 = jnp.zeros((1, NOUT), jnp.float32)
    Ug = jnp.zeros((H, NOUT), jnp.float32)   # for wrapper-side h0 bias fold
    extra = {"i": raw["b_i"], "f": raw["b_f"], "c": raw["b_c"], "o": raw["b_o"]}
    for g, name in enumerate(("i", "f", "c", "o")):
        Wf = Wf.at[:I, g * Hp:g * Hp + H].set(raw[f"W_{name}"])
        Ug = Ug.at[:, g * Hp:g * Hp + H].set(raw[f"U_{name}"])
        b0 = b0.at[0, g * Hp:g * Hp + H].set(
            raw[f"W_{name}_b"] + raw[f"U_{name}_b"] + extra[name])

    # Hawkes block-diagonal part: alpha->A, beta->B, theta->C
    Wf = Wf.at[I:I + K, 4 * Hp:4 * Hp + H].set(raw["A_w"])
    Wf = Wf.at[I + K:I + 2 * K, 5 * Hp:5 * Hp + H].set(raw["B_w"])
    Wf = Wf.at[I + 2 * K:I + 3 * K, 4 * Hp:4 * Hp + H].set(raw["C_w"])
    b0 = b0.at[0, 4 * Hp:4 * Hp + H].set(raw["A_b"] + raw["C_b"])
    b0 = b0.at[0, 5 * Hp:5 * Hp + H].set(raw["B_b"])

    Wy = jnp.zeros((Hp, Op), jnp.float32).at[:H, :O].set(raw["W_y"])
    by = jnp.zeros((1, Op), jnp.float32).at[0, :O].set(raw["W_y_b"])

    return dict(Wf=Wf.astype(jnp.bfloat16), b0=b0, Ug=Ug,
                Wy=Wy.astype(jnp.bfloat16), by=by,
                I=I, H=H, O=O, K=K, Hp=Hp, Op=Op, KIN=KIN, NOUT=NOUT)


# ---------------------------------------------------------------------------
# Wrapper
# ---------------------------------------------------------------------------
def hp_lstm_forward(packed, x, alpha, beta, theta, time_span, h0, c0):
    B = x.shape[0]
    I, H, O = packed["I"], packed["H"], packed["O"]
    Hp, Op = packed["Hp"], packed["Op"]
    KIN, NOUT = packed["KIN"], packed["NOUT"]

    # batch tile: multiple of 8 sublanes, capped at 256 (v6e/v7x MXU height);
    # >=2 grid steps for moderate batch so both v7x TensorCores get work.
    Bp8 = _round_up(B, 8)
    if Bp8 <= 16:
        TB = Bp8
    else:
        TB = min(256, _round_up((Bp8 + 1) // 2, 8))
    B_pad = _round_up(B, TB)

    # batch-shared recurrent state (torch module keeps self.h / self.c as (H,))
    # NOTE: the h0 bias fold is only valid while h0 is batch-shared.
    h0_row = h0.reshape(1, H).astype(jnp.float32)
    c0_row = jnp.zeros((1, Hp), jnp.float32).at[0, :H].set(
        c0.reshape(-1).astype(jnp.float32))

    # fold h0 @ [U_i|U_f|U_c|U_o] (rank-1, batch-shared) into the gate bias
    bias = packed["b0"] + h0_row @ packed["Ug"]          # (1, NOUT) f32

    # single fused kernel input; beta*ts scaling happens in-kernel
    z = jnp.concatenate([x, alpha, beta, theta], axis=1).astype(jnp.float32)
    ts = time_span.astype(jnp.float32).reshape(B, 1)
    if B_pad != B:
        z = jnp.pad(z, ((0, B_pad - B), (0, 0)))
        ts = jnp.pad(ts, ((0, B_pad - B), (0, 0)))

    slab_w = 2 * Hp + Op
    kernel = functools.partial(hp_lstm_kernel, hp=Hp, op=Op,
                               i_sz=I, k_sz=packed["K"])

    def batch_map(i):
        return (i, 0)

    def fixed_map(i):
        return (0, 0)

    out = pl.pallas_call(
        kernel,
        out_shape=jax.ShapeDtypeStruct((B_pad, slab_w), jnp.float32),
        grid_spec=pltpu.PrefetchScalarGridSpec(
            num_scalar_prefetch=0,
            grid=(B_pad // TB,),
            in_specs=[
                pl.BlockSpec((TB, KIN), batch_map),      # z = [x|a|b|t]
                pl.BlockSpec((TB, 1), batch_map),        # time_span
                pl.BlockSpec((1, Hp), fixed_map),        # c0
                pl.BlockSpec((KIN, NOUT), fixed_map),    # fused weight (bf16)
                pl.BlockSpec((1, NOUT), fixed_map),      # fused bias (f32)
                pl.BlockSpec((Hp, Op), fixed_map),       # Wy (bf16)
                pl.BlockSpec((1, Op), fixed_map),        # by
            ],
            out_specs=pl.BlockSpec((TB, slab_w), batch_map),
        ),
        compiler_params=pltpu.CompilerParams(
            dimension_semantics=("parallel",)),
    )(z, ts, c0_row, packed["Wf"], bias, packed["Wy"], packed["by"])

    y = out[:B, 2 * Hp:2 * Hp + O]
    h_new = out[:B, 0:H]
    c_new = out[:B, Hp:Hp + H]
    return y, h_new, c_new


# ---------------------------------------------------------------------------
# Pure-JAX reference (mirrors the torch module; matmul operands rounded to
# bf16 exactly as the kernel does, so differences are only accumulation order)
# ---------------------------------------------------------------------------
def _bf16r(a):
    return a.astype(jnp.bfloat16).astype(jnp.float32)


def hp_lstm_reference(raw, x, alpha, beta, theta, time_span, h0, c0):
    ts = time_span.astype(jnp.float32).reshape(-1, 1)
    h0 = h0.reshape(1, -1).astype(jnp.float32)
    c0 = c0.reshape(1, -1).astype(jnp.float32)

    def lin(inp, w, b):               # x / hawkes path: bf16 MXU operands
        return _bf16r(inp) @ _bf16r(w) + b

    def lin32(inp, w, b):             # h0 path is folded in f32 in the kernel
        return inp @ w + b

    hawkes = jnp.tanh(lin(alpha, raw["A_w"], raw["A_b"])
                      - jnp.exp(lin(beta * ts, raw["B_w"], raw["B_b"]))
                      + lin(theta, raw["C_w"], raw["C_b"]))
    i_t = jax.nn.sigmoid(lin(x, raw["W_i"], raw["W_i_b"])
                         + lin32(h0, raw["U_i"], raw["U_i_b"]) + raw["b_i"])
    f_t = jax.nn.sigmoid(lin(x, raw["W_f"], raw["W_f_b"])
                         + lin32(h0, raw["U_f"], raw["U_f_b"]) + raw["b_f"])
    g_t = jnp.tanh(lin(x, raw["W_c"], raw["W_c_b"])
                   + lin32(h0, raw["U_c"], raw["U_c_b"]) + raw["b_c"])
    o_t = jax.nn.sigmoid(lin(x, raw["W_o"], raw["W_o_b"])
                         + lin32(h0, raw["U_o"], raw["U_o_b"]) + raw["b_o"])
    c_new = hawkes * (f_t * c0 + i_t * g_t)
    h_new = o_t * jnp.tanh(c_new)
    y = lin(h_new, raw["W_y"], raw["W_y_b"])
    return y, h_new, c_new


if __name__ == "__main__":
    batch = 8
    input_size = 16
    hidden_size = 32
    output_size = 8
    hks_dim = 16

    key = jax.random.PRNGKey(0)
    kp, kx, ka, kb, kt, kts = jax.random.split(key, 6)

    raw = make_raw_params(kp, input_size, hidden_size, output_size, hks_dim)
    packed = pack_params(raw, input_size, hidden_size, output_size, hks_dim)

    x = jax.random.normal(kx, (batch, input_size), jnp.float32)
    alpha = jax.random.normal(ka, (batch, hks_dim), jnp.float32)
    beta = jax.random.normal(kb, (batch, hks_dim), jnp.float32)
    theta = jax.random.normal(kt, (batch, hks_dim), jnp.float32)
    time_span = jax.random.uniform(kts, (batch,), jnp.float32, 0.0, 2.0)

    # module initializes self.h / self.c to zeros (shared across batch)
    h0 = jnp.zeros((hidden_size,), jnp.float32)
    c0 = jnp.zeros((hidden_size,), jnp.float32)

    y, h_new, c_new = hp_lstm_forward(
        packed, x, alpha, beta, theta, time_span, h0, c0)
    jax.block_until_ready((y, h_new, c_new))

    y_ref, h_ref, c_ref = hp_lstm_reference(
        raw, x, alpha, beta, theta, time_span, h0, c0)

    assert y.shape == (batch, output_size)
    assert h_new.shape == (batch, hidden_size)
    assert c_new.shape == (batch, hidden_size)
    assert jnp.allclose(y, y_ref, atol=1e-3, rtol=1e-3), \
        float(jnp.max(jnp.abs(y - y_ref)))
    assert jnp.allclose(h_new, h_ref, atol=1e-3, rtol=1e-3), \
        float(jnp.max(jnp.abs(h_new - h_ref)))
    assert jnp.allclose(c_new, c_ref, atol=1e-3, rtol=1e-3), \
        float(jnp.max(jnp.abs(c_new - c_ref)))

    print("KERNEL_OK")
</pallas_src>

<mosaic_0001>
module attributes {stable_mosaic.version = 11 : i64} {
  func.func @hp_lstm_kernel(%arg0: i32, %arg1: memref<8x64xf32, #tpu.memory_space<vmem>>, %arg2: memref<8x1xf32, #tpu.memory_space<vmem>>, %arg3: memref<1x128xf32, #tpu.memory_space<vmem>>, %arg4: memref<64x768xbf16, #tpu.memory_space<vmem>>, %arg5: memref<1x768xf32, #tpu.memory_space<vmem>>, %arg6: memref<128x128xbf16, #tpu.memory_space<vmem>>, %arg7: memref<1x128xf32, #tpu.memory_space<vmem>>, %arg8: memref<8x384xf32, #tpu.memory_space<vmem>>) attributes {dimension_semantics = [#tpu.dimension_semantics<parallel>], iteration_bounds = array<i64: 1>, scalar_prefetch = 0 : i64, scratch_operands = 0 : i64, tpu.core_type = #tpu.core_type<tc>, window_params = [{transform_indices = @transform_0, window_bounds = array<i64: 8, 64>}, {transform_indices = @transform_1, window_bounds = array<i64: 8, 1>}, {pipeline_mode = #tpu.pipeline_mode<synchronous>, transform_indices = @transform_2, window_bounds = array<i64: 1, 128>}, {pipeline_mode = #tpu.pipeline_mode<synchronous>, transform_indices = @transform_3, window_bounds = array<i64: 64, 768>}, {pipeline_mode = #tpu.pipeline_mode<synchronous>, transform_indices = @transform_4, window_bounds = array<i64: 1, 768>}, {pipeline_mode = #tpu.pipeline_mode<synchronous>, transform_indices = @transform_5, window_bounds = array<i64: 128, 128>}, {pipeline_mode = #tpu.pipeline_mode<synchronous>, transform_indices = @transform_6, window_bounds = array<i64: 1, 128>}, {transform_indices = @transform_7, window_bounds = array<i64: 8, 384>}]} {
    %c0 = arith.constant 0 : index
    %c0_0 = arith.constant 0 : index
    %0 = vector.load %arg1[%c0, %c0_0] : memref<8x64xf32, #tpu.memory_space<vmem>>, vector<8x64xf32>
    %1 = tpu.iota {dimensions = array<i32: 1>} : vector<8x64xi32>
    %c32_i32 = arith.constant 32 : i32
    %2 = vector.broadcast %c32_i32 : i32 to vector<8x64xi32>
    %3 = arith.cmpi sge, %1, %2 : vector<8x64xi32>
    %c48_i32 = arith.constant 48 : i32
    %4 = vector.broadcast %c48_i32 : i32 to vector<8x64xi32>
    %5 = arith.cmpi slt, %1, %4 : vector<8x64xi32>
    %6 = arith.andi %3, %5 : vector<8x64xi1>
    %c0_1 = arith.constant 0 : index
    %c0_2 = arith.constant 0 : index
    %7 = vector.load %arg2[%c0_1, %c0_2] : memref<8x1xf32, #tpu.memory_space<vmem>>, vector<8x1xf32>
    %8 = vector.broadcast %7 : vector<8x1xf32> to vector<8x64xf32>
    %9 = arith.mulf %0, %8 : vector<8x64xf32>
    %10 = arith.select %6, %9, %0 : vector<8x64xi1>, vector<8x64xf32>
    %11 = arith.truncf %10 : vector<8x64xf32> to vector<8x64xbf16>
    %c0_3 = arith.constant 0 : index
    %c0_4 = arith.constant 0 : index
    %12 = vector.load %arg4[%c0_3, %c0_4] : memref<64x768xbf16, #tpu.memory_space<vmem>>, vector<64x768xbf16>
    %cst = arith.constant dense<0.000000e+00> : vector<8x768xf32>
    %13 = tpu.matmul %11, %12, %cst {dimension_numbers = #tpu.dot_dimension_numbers<[1], [0], [0], [1], [0, 0, 1, 1], [], []>} : vector<8x64xbf16>, vector<64x768xbf16>, vector<8x768xf32> -> vector<8x768xf32>
    %c0_5 = arith.constant 0 : index
    %c0_6 = arith.constant 0 : index
    %14 = vector.load %arg5[%c0_5, %c0_6] : memref<1x768xf32, #tpu.memory_space<vmem>>, vector<1x768xf32>
    %15 = vector.broadcast %14 : vector<1x768xf32> to vector<8x768xf32>
    %16 = arith.addf %13, %15 : vector<8x768xf32>
    %17 = vector.extract_strided_slice %16 {offsets = [0, 0], sizes = [8, 128], strides = [1, 1]} : vector<8x768xf32> to vector<8x128xf32>
    %18 = arith.negf %17 : vector<8x128xf32>
    %19 = math.exp %18 : vector<8x128xf32>
    %cst_7 = arith.constant 1.000000e+00 : f32
    %20 = vector.broadcast %cst_7 : f32 to vector<8x128xf32>
    %21 = arith.addf %20, %19 : vector<8x128xf32>
    %22 = arith.divf %20, %21 : vector<8x128xf32>
    %23 = vector.extract_strided_slice %16 {offsets = [0, 128], sizes = [8, 128], strides = [1, 1]} : vector<8x768xf32> to vector<8x128xf32>
    %24 = arith.negf %23 : vector<8x128xf32>
    %25 = math.exp %24 : vector<8x128xf32>
    %cst_8 = arith.constant 1.000000e+00 : f32
    %26 = vector.broadcast %cst_8 : f32 to vector<8x128xf32>
    %27 = arith.addf %26, %25 : vector<8x128xf32>
    %28 = arith.divf %26, %27 : vector<8x128xf32>
    %29 = vector.extract_strided_slice %16 {offsets = [0, 256], sizes = [8, 128], strides = [1, 1]} : vector<8x768xf32> to vector<8x128xf32>
    %30 = math.tanh %29 : vector<8x128xf32>
    %31 = vector.extract_strided_slice %16 {offsets = [0, 384], sizes = [8, 128], strides = [1, 1]} : vector<8x768xf32> to vector<8x128xf32>
    %32 = arith.negf %31 : vector<8x128xf32>
    %33 = math.exp %32 : vector<8x128xf32>
    %cst_9 = arith.constant 1.000000e+00 : f32
    %34 = vector.broadcast %cst_9 : f32 to vector<8x128xf32>
    %35 = arith.addf %34, %33 : vector<8x128xf32>
    %36 = arith.divf %34, %35 : vector<8x128xf32>
    %37 = vector.extract_strided_slice %16 {offsets = [0, 512], sizes = [8, 128], strides = [1, 1]} : vector<8x768xf32> to vector<8x128xf32>
    %38 = vector.extract_strided_slice %16 {offsets = [0, 640], sizes = [8, 128], strides = [1, 1]} : vector<8x768xf32> to vector<8x128xf32>
    %39 = math.exp %38 : vector<8x128xf32>
    %40 = arith.subf %37, %39 : vector<8x128xf32>
    %41 = math.tanh %40 : vector<8x128xf32>
    %c0_10 = arith.constant 0 : index
    %c0_11 = arith.constant 0 : index
    %42 = vector.load %arg3[%c0_10, %c0_11] : memref<1x128xf32, #tpu.memory_space<vmem>>, vector<1x128xf32>
    %43 = vector.broadcast %42 : vector<1x128xf32> to vector<8x128xf32>
    %44 = arith.mulf %28, %43 : vector<8x128xf32>
    %45 = arith.mulf %22, %30 : vector<8x128xf32>
    %46 = arith.addf %44, %45 : vector<8x128xf32>
    %47 = arith.mulf %41, %46 : vector<8x128xf32>
    %48 = math.tanh %47 : vector<8x128xf32>
    %49 = arith.mulf %36, %48 : vector<8x128xf32>
    %50 = arith.truncf %49 : vector<8x128xf32> to vector<8x128xbf16>
    %c0_12 = arith.constant 0 : index
    %c0_13 = arith.constant 0 : index
    %51 = vector.load %arg6[%c0_12, %c0_13] : memref<128x128xbf16, #tpu.memory_space<vmem>>, vector<128x128xbf16>
    %cst_14 = arith.constant dense<0.000000e+00> : vector<8x128xf32>
    %52 = tpu.matmul %50, %51, %cst_14 {dimension_numbers = #tpu.dot_dimension_numbers<[1], [0], [0], [1], [0, 0, 1, 1], [], []>} : vector<8x128xbf16>, vector<128x128xbf16>, vector<8x128xf32> -> vector<8x128xf32>
    %c0_15 = arith.constant 0 : index
    %c0_16 = arith.constant 0 : index
    %53 = vector.load %arg7[%c0_15, %c0_16] : memref<1x128xf32, #tpu.memory_space<vmem>>, vector<1x128xf32>
    %54 = vector.broadcast %53 : vector<1x128xf32> to vector<8x128xf32>
    %55 = arith.addf %52, %54 : vector<8x128xf32>
    %c0_17 = arith.constant 0 : index
    %c0_18 = arith.constant 0 : index
    %56 = vector.load %arg8[%c0_17, %c0_18] : memref<8x384xf32, #tpu.memory_space<vmem>>, vector<8x128xf32>
    tpu.vector_store %arg8[%c0_17, %c0_18], %49 {strides = array<i32>} : memref<8x384xf32, #tpu.memory_space<vmem>>, vector<8x128xf32>,
    %c0_19 = arith.constant 0 : index
    %c128 = arith.constant 128 : index
    %57 = vector.load %arg8[%c0_19, %c128] : memref<8x384xf32, #tpu.memory_space<vmem>>, vector<8x128xf32>
    tpu.vector_store %arg8[%c0_19, %c128], %47 {strides = array<i32>} : memref<8x384xf32, #tpu.memory_space<vmem>>, vector<8x128xf32>,
    %c0_20 = arith.constant 0 : index
    %c256 = arith.constant 256 : index
    %58 = vector.load %arg8[%c0_20, %c256] : memref<8x384xf32, #tpu.memory_space<vmem>>, vector<8x128xf32>
    tpu.vector_store %arg8[%c0_20, %c256], %55 {strides = array<i32>} : memref<8x384xf32, #tpu.memory_space<vmem>>, vector<8x128xf32>,
    return
  }
  func.func @transform_0(%arg0: i32) -> (i32, i32) {
    %c0_i32 = arith.constant 0 : i32
    %c0_i32_0 = arith.constant 0 : i32
    return %arg0, %c0_i32 : i32, i32
  }
  func.func @transform_1(%arg0: i32) -> (i32, i32) {
    %c0_i32 = arith.constant 0 : i32
    %c0_i32_0 = arith.constant 0 : i32
    return %arg0, %c0_i32 : i32, i32
  }
  func.func @transform_2(%arg0: i32) -> (i32, i32) {
    %c0_i32 = arith.constant 0 : i32
    %c0_i32_0 = arith.constant 0 : i32
    %c0_i32_1 = arith.constant 0 : i32
    return %c0_i32, %c0_i32_0 : i32, i32
  }
  func.func @transform_3(%arg0: i32) -> (i32, i32) {
    %c0_i32 = arith.constant 0 : i32
    %c0_i32_0 = arith.constant 0 : i32
    %c0_i32_1 = arith.constant 0 : i32
    return %c0_i32, %c0_i32_0 : i32, i32
  }
  func.func @transform_4(%arg0: i32) -> (i32, i32) {
    %c0_i32 = arith.constant 0 : i32
    %c0_i32_0 = arith.constant 0 : i32
    %c0_i32_1 = arith.constant 0 : i32
    return %c0_i32, %c0_i32_0 : i32, i32
  }
  func.func @transform_5(%arg0: i32) -> (i32, i32) {
    %c0_i32 = arith.constant 0 : i32
    %c0_i32_0 = arith.constant 0 : i32
    %c0_i32_1 = arith.constant 0 : i32
    return %c0_i32, %c0_i32_0 : i32, i32
  }
  func.func @transform_6(%arg0: i32) -> (i32, i32) {
    %c0_i32 = arith.constant 0 : i32
    %c0_i32_0 = arith.constant 0 : i32
    %c0_i32_1 = arith.constant 0 : i32
    return %c0_i32, %c0_i32_0 : i32, i32
  }
  func.func @transform_7(%arg0: i32) -> (i32, i32) {
    %c0_i32 = arith.constant 0 : i32
    %c0_i32_0 = arith.constant 0 : i32
    return %arg0, %c0_i32 : i32, i32
  }
}

</mosaic_0001>

<llo_original>
// kernel: tpu_custom_call.1
$region0: #{tpu_custom_call.1}
  #allocation0 [shape = 'u32[]', space=smem, size = 0x4, offset = 0x4, fixed_abs, tag = 'smem constant byte address 0x4 - core index']
  #allocation1 [shape = 'u32[72,128]{1,0:T(1,128)}', space=vmem, size = 0x9000, scoped, tag = 'internal scratch']
  %s0 = inlined_call_operand.vmem [shape: f32[8,64], index: 0, kind: input, shape index: {}]
  %s1 = inlined_call_operand.vmem [shape: f32[8,1], index: 1, kind: input, shape index: {}]
  %s2 = inlined_call_operand.vmem [shape: f32[1,128], index: 2, kind: input, shape index: {}]
  %s3 = inlined_call_operand.hbm [shape: bf16[64,768], index: 3, kind: input, shape index: {}]
  %s4 = inlined_call_operand.hbm [shape: f32[1,768], index: 4, kind: input, shape index: {}]
  %s5 = inlined_call_operand.hbm [shape: bf16[128,128], index: 5, kind: input, shape index: {}]
  %s6 = inlined_call_operand.vmem [shape: f32[1,128], index: 6, kind: input, shape index: {}]
  %s7 = inlined_call_operand.hbm [shape: f32[8,384], index: 7, kind: output, shape index: {}]
  %s8 = sld [smem:[#allocation0]]
  $region50: #{tpu_custom_call.1} parent=0
    _
  %s10 = ssub.s32 1, %s8
  %s11 = scalar_select 0, %s10, %s8
  $region1: #{tpu_custom_call.1} parent=0
    #allocation2 [shape = 'u8[98304]{0}', space=vmem, size = 0x18000, scoped, tag = 'input window, operand 3, single buffered']
    #allocation3 [shape = 's32[1]{0}', space=sflag, size = 0x4, scoped, tag = 'scoped memory for tpu_custom_call.1']
    #allocation4 [shape = 's32[1]{0}', space=sflag, size = 0x4, scoped, tag = 'scoped memory for tpu_custom_call.1']
    #allocation5 [shape = 'u8[3072]{0}', space=vmem, size = 0xc00, scoped, tag = 'input window, operand 4, single buffered']
    #allocation6 [shape = 's32[1]{0}', space=sflag, size = 0x4, scoped, tag = 'scoped memory for tpu_custom_call.1']
    #allocation7 [shape = 'u8[32768]{0}', space=vmem, size = 0x8000, scoped, tag = 'input window, operand 5, single buffered']
    #allocation8 [shape = 'u8[12288]{0}', space=vmem, size = 0x3000, scoped, tag = 'output window, operand 0, single buffered']
    %12 = vsyncpa [#allocation3], 0
    %13 = vsyncpa [#allocation6], 0
    %14 = vsyncpa [#allocation4], 0
    // Predicated region
    $region2: #{tpu_custom_call.1} parent=1 // pred_check
      _
    $region3: #{tpu_custom_call.1} parent=1 // pred_check_branch
      %16 = sbr.rel (0) target = $region5
    $region4: #{tpu_custom_call.1} parent=1 // pred_region
      _
    $region5: #{tpu_custom_call.1} parent=1 // pred_fallthru
      _
    // Predicated region
    $region6: #{tpu_custom_call.1} parent=1 // pred_check
      _
    $region7: #{tpu_custom_call.1} parent=1 // pred_check_branch
      %18 = sbr.rel (0) target = $region9
    $region8: #{tpu_custom_call.1} parent=1 // pred_region
      _
    $region9: #{tpu_custom_call.1} parent=1 // pred_fallthru
      _
    // Predicated region
    $region10: #{tpu_custom_call.1} parent=1 // pred_check
      _
    $region11: #{tpu_custom_call.1} parent=1 // pred_check_branch
      %20 = sbr.rel (0) target = $region13
    $region12: #{tpu_custom_call.1} parent=1 // pred_region
      _
    $region13: #{tpu_custom_call.1} parent=1 // pred_fallthru
      _
    // Predicated region
    $region14: #{tpu_custom_call.1} parent=1 // pred_check
      _
    $region15: #{tpu_custom_call.1} parent=1 // pred_check_branch
      %22 = sbr.rel (0) target = $region17
    $region16: #{tpu_custom_call.1} parent=1 // pred_region
      %24 = vsyncadd [#allocation3], 0
      %s25 = sshll.u32 %s3, 4
      %s26 = int_to_ptr.hbm [resolvable:$true] %s25
      %s27 = sshll.u32 [#allocation2], 4
      %s28 = int_to_ptr.vmem [resolvable:$true] %s27
      %33 = dma.hbm_to_vmem [thread:$0]  %s26, 3072, %s28, [#allocation3], 384, 384, 24
    $region17: #{tpu_custom_call.1} parent=1 // pred_fallthru
      _
    // Predicated region
    $region18: #{tpu_custom_call.1} parent=1 // pred_check
      _
    $region19: #{tpu_custom_call.1} parent=1 // pred_check_branch
      %35 = sbr.rel (0) target = $region21
    $region20: #{tpu_custom_call.1} parent=1 // pred_region
      %37 = vsyncadd [#allocation6], 0
      %s39 = sshll.u32 %s4, 4
      %s40 = int_to_ptr.hbm [resolvable:$true] %s39
      %s41 = sshll.u32 [#allocation5], 4
      %s42 = int_to_ptr.vmem [resolvable:$true] %s41
      %44 = dma.hbm_to_vmem [thread:$0]  %s40, 96, %s42, [#allocation6]
    $region21: #{tpu_custom_call.1} parent=1 // pred_fallthru
      _
    // Predicated region
    $region22: #{tpu_custom_call.1} parent=1 // pred_check
      _
    $region23: #{tpu_custom_call.1} parent=1 // pred_check_branch
      %46 = sbr.rel (0) target = $region25
    $region24: #{tpu_custom_call.1} parent=1 // pred_region
      %48 = vsyncadd [#allocation6], 0
      %s49 = sshll.u32 %s5, 4
      %s50 = int_to_ptr.hbm [resolvable:$true] %s49
      %s51 = sshll.u32 [#allocation7], 4
      %s52 = int_to_ptr.vmem [resolvable:$true] %s51
      %57 = dma.hbm_to_vmem [thread:$0]  %s50, 1024, %s52, [#allocation6], 64, 64, 4
    $region25: #{tpu_custom_call.1} parent=1 // pred_fallthru
      _
    // Predicated region
    $region26: #{tpu_custom_call.1} parent=1 // pred_check
      _
    $region27: #{tpu_custom_call.1} parent=1 // pred_check_branch
      %59 = sbr.rel (0) target = $region29
    $region28: #{tpu_custom_call.1} parent=1 // pred_region
      _
    $region29: #{tpu_custom_call.1} parent=1 // pred_fallthru
      _
    // Predicated region
    $region30: #{tpu_custom_call.1} parent=1 // pred_check
      _
    $region31: #{tpu_custom_call.1} parent=1 // pred_check_branch
      %61 = sbr.rel (0) target = $region33
    $region32: #{tpu_custom_call.1} parent=1 // pred_region
      %63 = dma.done [#allocation3], 3072
    $region33: #{tpu_custom_call.1} parent=1 // pred_fallthru
      _
    // Predicated region
    $region34: #{tpu_custom_call.1} parent=1 // pred_check
      _
    $region35: #{tpu_custom_call.1} parent=1 // pred_check_branch
      %65 = sbr.rel (0) target = $region37
    $region36: #{tpu_custom_call.1} parent=1 // pred_region
      %67 = dma.done [#allocation6], 96
    $region37: #{tpu_custom_call.1} parent=1 // pred_fallthru
      _
    // Predicated region
    $region38: #{tpu_custom_call.1} parent=1 // pred_check
      _
    $region39: #{tpu_custom_call.1} parent=1 // pred_check_branch
      %69 = sbr.rel (0) target = $region41
    $region40: #{tpu_custom_call.1} parent=1 // pred_region
      %71 = dma.done [#allocation6], 1024
    $region41: #{tpu_custom_call.1} parent=1 // pred_fallthru
      _
    %v73 = vld [vmem:[%s0] sm:$0xff]
    %v74 = vlaneseq
    %v75 = vand.u32 %v74, 127
    %vm76 = vcmp.ge.s32.totalorder %v75, 32
    %vm77 = vcmp.lt.s32.totalorder %v75, 48
    %vm78 = vmand %vm76, %vm77
    %v79 = vld [vmem:[%s1] sm:$0xff]
    %81 = vset.pattern.permute.xlu0 0
    %82 = vperm.xlu0 %81, %v79
    %v83 = vpop.permute.xlu0 %82
    %v85 = vmul.f32 %v73, %v83
    %v86 = vsel %vm78, %v85, %v73
    %v87 = vpack.c.bf16 %v86, %v86
    %v88 = vld [vmem:[#allocation2] sm:$0xff]
    %v89 = vld [vmem:[#allocation2 + $0x8] sm:$0xff]
    %v90 = vld [vmem:[#allocation2 + $0x10] sm:$0xff]
    %v91 = vld [vmem:[#allocation2 + $0x18] sm:$0xff]
    %v92 = vld [vmem:[#allocation2 + $0x20] sm:$0xff]
    %v93 = vld [vmem:[#allocation2 + $0x28] sm:$0xff]
    %v94 = vld [vmem:[#allocation2 + $0x30] sm:$0xff]
    %v95 = vld [vmem:[#allocation2 + $0x38] sm:$0xff]
    %v96 = vld [vmem:[#allocation2 + $0x40] sm:$0xff]
    %v97 = vld [vmem:[#allocation2 + $0x48] sm:$0xff]
    %v98 = vld [vmem:[#allocation2 + $0x50] sm:$0xff]
    %v99 = vld [vmem:[#allocation2 + $0x58] sm:$0xff]
    %v100 = vld [vmem:[#allocation2 + $0x60] sm:$0xff]
    %v101 = vld [vmem:[#allocation2 + $0x68] sm:$0xff]
    %v102 = vld [vmem:[#allocation2 + $0x70] sm:$0xff]
    %v103 = vld [vmem:[#allocation2 + $0x78] sm:$0xff]
    %v104 = vld [vmem:[#allocation2 + $0x80] sm:$0xff]
    %v105 = vld [vmem:[#allocation2 + $0x88] sm:$0xff]
    %v106 = vld [vmem:[#allocation2 + $0x90] sm:$0xff]
    %v107 = vld [vmem:[#allocation2 + $0x98] sm:$0xff]
    %v108 = vld [vmem:[#allocation2 + $0xa0] sm:$0xff]
    %v109 = vld [vmem:[#allocation2 + $0xa8] sm:$0xff]
    %v110 = vld [vmem:[#allocation2 + $0xb0] sm:$0xff]
    %v111 = vld [vmem:[#allocation2 + $0xb8] sm:$0xff]
    %v112 = vld [vmem:[#allocation5] sm:$0x3f]
    %v114 = vperm.slane %v112, 0
    %v115 = vperm.slane %v112, 1
    %v116 = vperm.slane %v112, 2
    %v117 = vperm.slane %v112, 3
    %v118 = vperm.slane %v112, 4
    %v119 = vperm.slane %v112, 5
    %v150 = vunpack.c.l.b16 %v88
    %v151 = vunpack.c.h.b16 %v88
    %v152 = vunpack.c.l.b16 %v89
    %v153 = vunpack.c.h.b16 %v89
    %v154 = vunpack.c.l.b16 %v90
    %v155 = vunpack.c.h.b16 %v90
    %v156 = vunpack.c.l.b16 %v91
    %v157 = vunpack.c.h.b16 %v91
    %v158 = vunpack.c.l.b16 %v92
    %v159 = vunpack.c.h.b16 %v92
    %v160 = vunpack.c.l.b16 %v93
    %v161 = vunpack.c.h.b16 %v93
    %v162 = vunpack.c.l.b16 %v94
    %v163 = vunpack.c.h.b16 %v94
    %v164 = vunpack.c.l.b16 %v95
    %v165 = vunpack.c.h.b16 %v95
    %v166 = vunpack.c.l.b16 %v96
    %v167 = vunpack.c.h.b16 %v96
    %v168 = vunpack.c.l.b16 %v97
    %v169 = vunpack.c.h.b16 %v97
    %v170 = vunpack.c.l.b16 %v98
    %v171 = vunpack.c.h.b16 %v98
    %v172 = vunpack.c.l.b16 %v99
    %v173 = vunpack.c.h.b16 %v99
    %v174 = vunpack.c.l.b16 %v100
    %v175 = vunpack.c.h.b16 %v100
    %v176 = vunpack.c.l.b16 %v101
    %v177 = vunpack.c.h.b16 %v101
    %v178 = vunpack.c.l.b16 %v102
    %v179 = vunpack.c.h.b16 %v102
    %v180 = vunpack.c.l.b16 %v103
    %v181 = vunpack.c.h.b16 %v103
    %v182 = vunpack.c.l.b16 %v104
    %v183 = vunpack.c.h.b16 %v104
    %v184 = vunpack.c.l.b16 %v105
    %v185 = vunpack.c.h.b16 %v105
    %v186 = vunpack.c.l.b16 %v106
    %v187 = vunpack.c.h.b16 %v106
    %v188 = vunpack.c.l.b16 %v107
    %v189 = vunpack.c.h.b16 %v107
    %v190 = vunpack.c.l.b16 %v108
    %v191 = vunpack.c.h.b16 %v108
    %v192 = vunpack.c.l.b16 %v109
    %v193 = vunpack.c.h.b16 %v109
    %v194 = vunpack.c.l.b16 %v110
    %v195 = vunpack.c.h.b16 %v110
    %v196 = vunpack.c.l.b16 %v111
    %v197 = vunpack.c.h.b16 %v111
    %v198 = vpack.c.b16 %v156, %v150
    %v199 = vpack.c.b16 %v157, %v151
    %v200 = vpack.c.b16 %v158, %v152
    %v201 = vpack.c.b16 %v159, %v153
    %v202 = vpack.c.b16 %v160, %v154
    %v203 = vpack.c.b16 %v161, %v155
    %v204 = vpack.c.b16 %v168, %v162
    %v205 = vpack.c.b16 %v169, %v163
    %v206 = vpack.c.b16 %v170, %v164
    %v207 = vpack.c.b16 %v171, %v165
    %v208 = vpack.c.b16 %v172, %v166
    %v209 = vpack.c.b16 %v173, %v167
    %v210 = vpack.c.b16 %v180, %v174
    %v211 = vpack.c.b16 %v181, %v175
    %v212 = vpack.c.b16 %v182, %v176
    %v213 = vpack.c.b16 %v183, %v177
    %v214 = vpack.c.b16 %v184, %v178
    %v215 = vpack.c.b16 %v185, %v179
    %v216 = vpack.c.b16 %v192, %v186
    %v217 = vpack.c.b16 %v193, %v187
    %v218 = vpack.c.b16 %v194, %v188
    %v219 = vpack.c.b16 %v195, %v189
    %v220 = vpack.c.b16 %v196, %v190
    %v221 = vpack.c.b16 %v197, %v191
    %vm246 = vcmask 523264
    %v248 = vsel %vm246, %v87, 0
    %250 = vmatpush.bf16.msra.mxu0 0
    %251 = vmatpush.bf16.msra.mxu0 0
    %252 = vmatpush.bf16.msra.mxu0 0
    %253 = vmatpush.bf16.msra.mxu0 0
    %254 = vmatpush.bf16.msra.mxu0 %v216
    %255 = vmatpush.bf16.msra.mxu0 %v210
    %256 = vmatpush.bf16.msra.mxu0 %v204
    %257 = vmatpush.bf16.msra.mxu0 %v198
    %258 = vmatmul.bf16.gmra.mxu0 %v248
    %v259 = vpop.f32.mrf.mxu0
    %v260 = vadd.f32 %v114, %v259
    %v261 = vpop.f32.mrf.mxu0
    %262 = vdwg.mxu0
    %263 = vmatpush.bf16.msra.mxu0 0
    %264 = vmatpush.bf16.msra.mxu0 0
    %265 = vmatpush.bf16.msra.mxu0 0
    %266 = vmatpush.bf16.msra.mxu0 0
    %267 = vmatpush.bf16.msra.mxu0 %v217
    %268 = vmatpush.bf16.msra.mxu0 %v211
    %269 = vmatpush.bf16.msra.mxu0 %v205
    %270 = vmatpush.bf16.msra.mxu0 %v199
    %271 = vmatmul.bf16.gmra.mxu0 %v248
    %v272 = vpop.f32.mrf.mxu0
    %v273 = vadd.f32 %v115, %v272
    %v274 = vpop.f32.mrf.mxu0
    %275 = vdwg.mxu0
    %276 = vmatpush.bf16.msra.mxu0 0
    %277 = vmatpush.bf16.msra.mxu0 0
    %278 = vmatpush.bf16.msra.mxu0 0
    %279 = vmatpush.bf16.msra.mxu0 0
    %280 = vmatpush.bf16.msra.mxu0 %v218
    %281 = vmatpush.bf16.msra.mxu0 %v212
    %282 = vmatpush.bf16.msra.mxu0 %v206
    %283 = vmatpush.bf16.msra.mxu0 %v200
    %284 = vmatmul.bf16.gmra.mxu0 %v248
    %v285 = vpop.f32.mrf.mxu0
    %v286 = vadd.f32 %v116, %v285
    %v287 = vpop.f32.mrf.mxu0
    %288 = vdwg.mxu0
    %289 = vmatpush.bf16.msra.mxu0 0
    %290 = vmatpush.bf16.msra.mxu0 0
    %291 = vmatpush.bf16.msra.mxu0 0
    %292 = vmatpush.bf16.msra.mxu0 0
    %293 = vmatpush.bf16.msra.mxu0 %v219
    %294 = vmatpush.bf16.msra.mxu0 %v213
    %295 = vmatpush.bf16.msra.mxu0 %v207
    %296 = vmatpush.bf16.msra.mxu0 %v201
    %297 = vmatmul.bf16.gmra.mxu0 %v248
    %v298 = vpop.f32.mrf.mxu0
    %v299 = vadd.f32 %v117, %v298
    %v300 = vpop.f32.mrf.mxu0
    %301 = vdwg.mxu0
    %302 = vmatpush.bf16.msra.mxu0 0
    %303 = vmatpush.bf16.msra.mxu0 0
    %304 = vmatpush.bf16.msra.mxu0 0
    %305 = vmatpush.bf16.msra.mxu0 0
    %306 = vmatpush.bf16.msra.mxu0 %v220
    %307 = vmatpush.bf16.msra.mxu0 %v214
    %308 = vmatpush.bf16.msra.mxu0 %v208
    %309 = vmatpush.bf16.msra.mxu0 %v202
    %310 = vmatmul.bf16.gmra.mxu0 %v248
    %v311 = vpop.f32.mrf.mxu0
    %v312 = vadd.f32 %v118, %v311
    %v313 = vpop.f32.mrf.mxu0
    %314 = vdwg.mxu0
    %315 = vmatpush.bf16.msra.mxu0 0
    %316 = vmatpush.bf16.msra.mxu0 0
    %317 = vmatpush.bf16.msra.mxu0 0
    %318 = vmatpush.bf16.msra.mxu0 0
    %319 = vmatpush.bf16.msra.mxu0 %v221
    %320 = vmatpush.bf16.msra.mxu0 %v215
    %321 = vmatpush.bf16.msra.mxu0 %v209
    %322 = vmatpush.bf16.msra.mxu0 %v203
    %323 = vmatmul.bf16.gmra.mxu0 %v248
    %v324 = vpop.f32.mrf.mxu0
    %v325 = vadd.f32 %v119, %v324
    %v326 = vpop.f32.mrf.mxu0
    %327 = vdwg.mxu0
    %v328 = vxor.u32 %v260, 2147483648
    %v329 = vmul.f32 %v328, 1.442695
    %v330 = vpow.pop %v329
    %v331 = vadd.f32 %v330, 1.0
    %v332 = vrcp.pop %v331
    %v333 = vmul.f32 %v331, %v332
    %v334 = vsub.f32 1.0, %v333
    %v335 = vmul.f32 %v332, %v334
    %v336 = vadd.f32 %v332, %v335
    %vm337 = vweird.f32 %v331
    %vm338 = vweird.f32 %v332
    %vm339 = vmor %vm337, %vm338
    %v340 = vsel %vm339, %v332, %v336
    %v341 = vand.u32 2147483647, %v331
    %vm342 = vcmp.eq.f32.partialorder %v341, 8.507059e+37
    %v343 = vand.u32 %v331, 2147483648
    %v344 = vor.u32 1.1754944e-38, %v343
    %v345 = vsel %vm342, %v344, %v340
    %v346 = vmul.f32 1.0, %v345
    %v347 = vxor.u32 %v273, 2147483648
    %v348 = vmul.f32 %v347, 1.442695
    %v349 = vpow.pop %v348
    %v350 = vadd.f32 %v349, 1.0
    %v351 = vrcp.pop %v350
    %v352 = vmul.f32 %v350, %v351
    %v353 = vsub.f32 1.0, %v352
    %v354 = vmul.f32 %v351, %v353
    %v355 = vadd.f32 %v351, %v354
    %vm356 = vweird.f32 %v350
    %vm357 = vweird.f32 %v351
    %vm358 = vmor %vm356, %vm357
    %v359 = vsel %vm358, %v351, %v355
    %v360 = vand.u32 2147483647, %v350
    %vm361 = vcmp.eq.f32.partialorder %v360, 8.507059e+37
    %v362 = vand.u32 %v350, 2147483648
    %v363 = vor.u32 1.1754944e-38, %v362
    %v364 = vsel %vm361, %v363, %v359
    %v365 = vmul.f32 1.0, %v364
    %v366 = vtanh.pop %v286
    %v367 = vxor.u32 %v299, 2147483648
    %v368 = vmul.f32 %v367, 1.442695
    %v369 = vpow.pop %v368
    %v370 = vadd.f32 %v369, 1.0
    %v371 = vrcp.pop %v370
    %v372 = vmul.f32 %v370, %v371
    %v373 = vsub.f32 1.0, %v372
    %v374 = vmul.f32 %v371, %v373
    %v375 = vadd.f32 %v371, %v374
    %vm376 = vweird.f32 %v370
    %vm377 = vweird.f32 %v371
    %vm378 = vmor %vm376, %vm377
    %v379 = vsel %vm378, %v371, %v375
    %v380 = vand.u32 2147483647, %v370
    %vm381 = vcmp.eq.f32.partialorder %v380, 8.507059e+37
    %v382 = vand.u32 %v370, 2147483648
    %v383 = vor.u32 1.1754944e-38, %v382
    %v384 = vsel %vm381, %v383, %v379
    %v385 = vmul.f32 1.0, %v384
    %v386 = vmul.f32 %v325, 1.442695
    %v387 = vpow.pop %v386
    %v388 = vsub.f32 %v312, %v387
    %v389 = vtanh.pop %v388
    %v390 = vld [vmem:[%s2] sm:$0x1]
    %v392 = vperm.slane %v390, 0
    %v394 = vmul.f32 %v365, %v392
    %v395 = vmul.f32 %v346, %v366
    %v396 = vadd.f32 %v394, %v395
    %v397 = vmul.f32 %v389, %v396
    %v398 = vtanh.pop %v397
    %v399 = vmul.f32 %v385, %v398
    %v400 = vpack.c.bf16 %v399, %v399
    %v401 = vld [vmem:[#allocation7] sm:$0xf]
    %v402 = vld [vmem:[#allocation7 + $0x4] sm:$0xf]
    %v403 = vld [vmem:[#allocation7 + $0x8] sm:$0xf]
    %v404 = vld [vmem:[#allocation7 + $0xc] sm:$0xf]
    %v405 = vld [vmem:[#allocation7 + $0x10] sm:$0xf]
    %v406 = vld [vmem:[#allocation7 + $0x14] sm:$0xf]
    %v407 = vld [vmem:[#allocation7 + $0x18] sm:$0xf]
    %v408 = vld [vmem:[#allocation7 + $0x1c] sm:$0xf]
    %v409 = vld [vmem:[#allocation7 + $0x20] sm:$0xf]
    %v410 = vld [vmem:[#allocation7 + $0x24] sm:$0xf]
    %v411 = vld [vmem:[#allocation7 + $0x28] sm:$0xf]
    %v412 = vld [vmem:[#allocation7 + $0x2c] sm:$0xf]
    %v413 = vld [vmem:[#allocation7 + $0x30] sm:$0xf]
    %v414 = vld [vmem:[#allocation7 + $0x34] sm:$0xf]
    %v415 = vld [vmem:[#allocation7 + $0x38] sm:$0xf]
    %v416 = vld [vmem:[#allocation7 + $0x3c] sm:$0xf]
    %v417 = vld [vmem:[%s6] sm:$0x1]
    %v419 = vperm.slane %v417, 0
    %v437 = vunpack.c.l.b16 %v401
    %v438 = vunpack.c.l.b16 %v402
    %v439 = vunpack.c.l.b16 %v403
    %v440 = vunpack.c.l.b16 %v404
    %v441 = vunpack.c.l.b16 %v405
    %v442 = vunpack.c.l.b16 %v406
    %v443 = vunpack.c.l.b16 %v407
    %v444 = vunpack.c.l.b16 %v408
    %v445 = vunpack.c.l.b16 %v409
    %v446 = vunpack.c.l.b16 %v410
    %v447 = vunpack.c.l.b16 %v411
    %v448 = vunpack.c.l.b16 %v412
    %v449 = vunpack.c.l.b16 %v413
    %v450 = vunpack.c.l.b16 %v414
    %v451 = vunpack.c.l.b16 %v415
    %v452 = vunpack.c.l.b16 %v416
    %v453 = vpack.c.b16 %v438, %v437
    %v454 = vpack.c.b16 %v440, %v439
    %v455 = vpack.c.b16 %v442, %v441
    %v456 = vpack.c.b16 %v444, %v443
    %v457 = vpack.c.b16 %v446, %v445
    %v458 = vpack.c.b16 %v448, %v447
    %v459 = vpack.c.b16 %v450, %v449
    %v460 = vpack.c.b16 %v452, %v451
    %469 = vmatpush.bf16.msra.mxu0 %v460
    %470 = vmatpush.bf16.msra.mxu0 %v459
    %471 = vmatpush.bf16.msra.mxu0 %v458
    %472 = vmatpush.bf16.msra.mxu0 %v457
    %473 = vmatpush.bf16.msra.mxu0 %v456
    %474 = vmatpush.bf16.msra.mxu0 %v455
    %475 = vmatpush.bf16.msra.mxu0 %v454
    %476 = vmatpush.bf16.msra.mxu0 %v453
    %477 = vmatmul.bf16.gmra.mxu0 %v400
    %v478 = vpop.f32.mrf.mxu0
    %v479 = vadd.f32 %v419, %v478
    %v480 = vpop.f32.mrf.mxu0
    %481 = vdwg.mxu0
    %482 = vst [vmem:[#allocation8] sm:$0xff] %v399
    %483 = vst [vmem:[#allocation8 + $0x8] sm:$0xff] %v397
    %484 = vst [vmem:[#allocation8 + $0x10] sm:$0xff] %v479
    // Predicated region
    $region42: #{tpu_custom_call.1} parent=1 // pred_check
      _
    $region43: #{tpu_custom_call.1} parent=1 // pred_check_branch
      %486 = sbr.rel (0) target = $region45
    $region44: #{tpu_custom_call.1} parent=1 // pred_region
      %488 = vsyncadd [#allocation4], 0
      %s490 = sshll.u32 [#allocation8], 4
      %s491 = int_to_ptr.vmem [resolvable:$true] %s490
      %s492 = sshll.u32 %s7, 4
      %s493 = int_to_ptr.hbm [resolvable:$true] %s492
      %495 = dma.vmem_to_hbm [thread:$0]  %s491, 384, %s493, [#allocation4]
    $region45: #{tpu_custom_call.1} parent=1 // pred_fallthru
      _
    // Predicated region
    $region46: #{tpu_custom_call.1} parent=1 // pred_check
      _
    $region47: #{tpu_custom_call.1} parent=1 // pred_check_branch
      %497 = sbr.rel (0) target = $region49
    $region48: #{tpu_custom_call.1} parent=1 // pred_region
      %499 = dma.done [#allocation4], 384
    $region49: #{tpu_custom_call.1} parent=1 // pred_fallthru
      _
    %500 = vsyncpa [#allocation3], 1
    %501 = vsyncpa [#allocation6], 1
    %502 = vsyncpa [#allocation4], 1

</llo_original>
